<compile_context>
chip_gen: v6e
topology: v6e:2x2x1
jax: 0.10.0
libtpu: 0.0.40
codegen_flags: <defaults>
</compile_context>

<pallas_src>
import functools
import math

import numpy as np

import jax
import jax.numpy as jnp
from jax import lax
from jax.experimental import pallas as pl
from jax.experimental.pallas import tpu as pltpu


def _residual_block_kernel(mask_ref, w1_ref, b1_ref, w2_ref, b2_ref, x_ref, o_ref, *, W):
    """One block of B flattened images per grid step.

    mask_ref       : (4, HWp) VMEM f32 -- [m_left, m_right, m_up, m_down] 0/1 masks
                     (constant across the grid; built once in the wrapper)
    w1_ref, w2_ref : (3, 3) SMEM  -- ConvTranspose2d weights (channel dims squeezed)
    b1_ref, b2_ref : (1,)   SMEM  -- biases
    x_ref, o_ref   : (B, HWp) VMEM -- images flattened along the lane axis
    """
    f32 = jnp.float32
    x = x_ref[...].astype(f32)          # (B, HWp)
    HWp = x.shape[1]

    # Precomputed boundary masks; (1, HWp) broadcasts over the B sublanes.
    m_left = mask_ref[0:1, :]           # w-1 >= 0
    m_right = mask_ref[1:2, :]          # w+1 <= W-1
    m_up = mask_ref[2:3, :]             # h-1 >= 0
    m_down = mask_ref[3:4, :]           # h+1 <= H-1

    def shift(a, s, m):
        # r[p] = a[p + s] inside the image, 0 outside (mask multiply).
        # pltpu.roll rides the XLU slot; the mask-mul is one VPU op.
        return pltpu.roll(a, (-s) % HWp, axis=1) * m

    def conv3x3(a, w_ref, b_ref):
        # ConvTranspose2d(k=3, s=1, p=1) == correlation with the flipped kernel:
        # coefficient of a[h+di, w+dj] is w[1-di, 1-dj].
        # Hoist the 9 scalar weight reads; rows indexed di = -1, 0, +1.
        wt = [[w_ref[1 - di, 1 - dj] for dj in (-1, 0, 1)] for di in (-1, 0, 1)]

        # Horizontal pass (once per conv): left / right neighbours.
        a_l = shift(a, -1, m_left)      # a[h, w-1]
        a_r = shift(a, +1, m_right)     # a[h, w+1]

        # Per-kernel-row combinations.
        t_m = wt[0][0] * a_l + wt[0][1] * a + wt[0][2] * a_r   # contributes from row h-1
        t_c = wt[1][0] * a_l + wt[1][1] * a + wt[1][2] * a_r   # row h
        t_p = wt[2][0] * a_l + wt[2][1] * a + wt[2][2] * a_r   # contributes from row h+1

        # Vertical pass: pull t_m from the row above, t_p from the row below.
        return t_c + shift(t_m, -W, m_up) + shift(t_p, +W, m_down) + b_ref[0]

    # conv #1 + exact (erf) GELU.  NOTE: lax.erf expands to a VPU polynomial (not a
    # native EUP op); kept exact to match nn.GELU() default numerics.
    h1 = conv3x3(x, w1_ref, b1_ref)
    g = 0.5 * h1 * (1.0 + lax.erf(h1 * (1.0 / math.sqrt(2.0))))

    # conv #2 on the in-register intermediate + residual; one dense store.
    y = conv3x3(g, w2_ref, b2_ref) + x
    o_ref[...] = y.astype(o_ref.dtype)


def _tpu_vmem_bytes():
    """Per-core VMEM capacity; conservative (v7x) default if the query fails."""
    default = 64 * 1024 * 1024
    try:
        info = pltpu.get_tpu_info()
        return int(getattr(info, "vmem_capacity_bytes", default))
    except Exception:
        return default


def _choose_batch_block(N, HWp, budget_bytes):
    """Pick B (divides N): largest block fitting the budget, 8-row aligned when tiling.

    Footprint estimate per image: (2 in + 2 out pipeline buffers) + ~10 live f32
    (B, HWp) temporaries after the two-pass rewrite  ->  ~14 * HWp * 4 bytes.
    Never returns an oversized block (worst case B = 1).
    """
    per_img = HWp * 4 * 14
    cap = min(max(1, budget_bytes // per_img), N)

    if cap >= N:
        # Whole batch fits in one block; split in two (megacore / v7x 2 TCs) only if
        # both halves stay 8-sublane aligned.
        half = N // 2
        if N % 2 == 0 and half >= 8 and half % 8 == 0:
            return half
        return N

    # Need tiling: largest multiple-of-8 divisor of N that fits the budget.
    best = 0
    for d in range(8, cap + 1, 8):
        if N % d == 0:
            best = d
    if best:
        return best
    # Fallback: largest divisor that fits (sub-8 blocks -> masked sublane stores,
    # still far better than VMEM OOM).
    best = 1
    for d in range(1, cap + 1):
        if N % d == 0:
            best = d
    return best


def residual_block(x, w1, b1, w2, b2):
    """x: (N, 1, H, W) float32. Weights: (1, 1, 3, 3) each; biases: (1,) each."""
    N, C, H, W = x.shape
    assert C == 1
    HW = H * W
    HWp = ((HW + 127) // 128) * 128                     # lane-dense (multiple of 128)

    xf = x.reshape(N, HW)                               # row-major flatten
    if HWp != HW:
        xf = jnp.pad(xf, ((0, 0), (0, HWp - HW)))       # pad lanes; folded into masks

    # Boundary masks depend only on (H, W): build once on the host (numpy), pass as a
    # tiny constant VMEM input so the kernel does zero mask construction per step.
    p = np.arange(HWp)
    col = p % W
    valid = p < HW
    masks_np = np.stack([
        (col >= 1) & valid,            # m_left
        (col <= W - 2) & valid,        # m_right
        (p >= W) & valid,              # m_up
        (p < (H - 1) * W) & valid,     # m_down
    ]).astype(np.float32)
    masks = jnp.asarray(masks_np)

    # Generation-aware VMEM budgets: v5e/v6e (128 MiB) -> limit 64 MiB, block budget
    # ~32 MiB; v7x (64 MiB/core) -> limit 32 MiB, block budget ~16 MiB.
    vmem_limit = min(_tpu_vmem_bytes() // 2, 64 * 1024 * 1024)
    B = _choose_batch_block(N, HWp, vmem_limit // 2)
    grid = (N // B,)

    out = pl.pallas_call(
        functools.partial(_residual_block_kernel, W=W),
        out_shape=jax.ShapeDtypeStruct((N, HWp), x.dtype),
        grid=grid,
        in_specs=[
            pl.BlockSpec((4, HWp), lambda n: (0, 0)),              # masks (constant block)
            pl.BlockSpec(memory_space=pltpu.MemorySpace.SMEM),     # w1 (3,3)
            pl.BlockSpec(memory_space=pltpu.MemorySpace.SMEM),     # b1 (1,)
            pl.BlockSpec(memory_space=pltpu.MemorySpace.SMEM),     # w2 (3,3)
            pl.BlockSpec(memory_space=pltpu.MemorySpace.SMEM),     # b2 (1,)
            pl.BlockSpec((B, HWp), lambda n: (n, 0)),              # x block
        ],
        out_specs=pl.BlockSpec((B, HWp), lambda n: (n, 0)),
        compiler_params=pltpu.CompilerParams(
            dimension_semantics=("parallel",),                     # batch axis -> megacore
            vmem_limit_bytes=vmem_limit),
    )(masks, w1[0, 0], b1, w2[0, 0], b2, xf)

    if HWp != HW:
        out = out[:, :HW]
    return out.reshape(N, 1, H, W)


def residual_block_ref(x, w1, b1, w2, b2):
    """Pure-JAX reference of the PyTorch forward pass."""
    def convT(x2, w, b):   # x2: (N,H,W), w: (1,1,3,3)
        wf = w[0, 0][::-1, ::-1][None, None]            # flip -> correlation kernel
        y = lax.conv_general_dilated(
            x2[:, None], wf, window_strides=(1, 1), padding=((1, 1), (1, 1)))
        return y[:, 0] + b[0]

    x2 = x[:, 0]
    h = convT(x2, w1, b1)
    h = 0.5 * h * (1.0 + lax.erf(h / math.sqrt(2.0)))
    y = convT(h, w2, b2) + x2
    return y[:, None]


if __name__ == "__main__":
    key = jax.random.PRNGKey(0)
    k1, k2, k3, k4, kx = jax.random.split(key, 5)

    # Deterministic synthetic parameters (ConvTranspose2d weight shape: (Cin,Cout,3,3)).
    w1 = jax.random.normal(k1, (1, 1, 3, 3), jnp.float32) * 0.3
    b1 = jax.random.normal(k2, (1,), jnp.float32) * 0.1
    w2 = jax.random.normal(k3, (1, 1, 3, 3), jnp.float32) * 0.3
    b2 = jax.random.normal(k4, (1,), jnp.float32) * 0.1

    # Small input consistent with the module: NCHW with 1 channel.
    x = jax.random.normal(kx, (2, 1, 16, 16), jnp.float32)

    y = residual_block(x, w1, b1, w2, b2)
    y = jax.block_until_ready(y)

    y_ref = residual_block_ref(x, w1, b1, w2, b2)
    assert y.shape == x.shape
    assert jnp.allclose(y, y_ref, atol=1e-5, rtol=1e-5), "mismatch vs reference"

    print("KERNEL_OK")
</pallas_src>

<mosaic_0001>
module attributes {stable_mosaic.version = 11 : i64} {
  func.func @_residual_block_kernel(%arg0: i32, %arg1: memref<4x256xf32, #tpu.memory_space<vmem>>, %arg2: memref<3x3xf32, #tpu.memory_space<smem>>, %arg3: memref<1xf32, #tpu.memory_space<smem>>, %arg4: memref<3x3xf32, #tpu.memory_space<smem>>, %arg5: memref<1xf32, #tpu.memory_space<smem>>, %arg6: memref<2x256xf32, #tpu.memory_space<vmem>>, %arg7: memref<2x256xf32, #tpu.memory_space<vmem>>) attributes {dimension_semantics = [#tpu.dimension_semantics<parallel>], iteration_bounds = array<i64: 1>, scalar_prefetch = 0 : i64, scratch_operands = 0 : i64, tpu.core_type = #tpu.core_type<tc>, window_params = [{pipeline_mode = #tpu.pipeline_mode<synchronous>, transform_indices = @transform_0, window_bounds = array<i64: 4, 256>}, {transform_indices = @transform_1, window_bounds = array<i64: 3, 3>}, {transform_indices = @transform_2, window_bounds = array<i64: 1>}, {transform_indices = @transform_3, window_bounds = array<i64: 3, 3>}, {transform_indices = @transform_4, window_bounds = array<i64: 1>}, {transform_indices = @transform_5, window_bounds = array<i64: 2, 256>}, {transform_indices = @transform_6, window_bounds = array<i64: 2, 256>}]} {
    %c0 = arith.constant 0 : index
    %c0_0 = arith.constant 0 : index
    %0 = vector.load %arg6[%c0, %c0_0] : memref<2x256xf32, #tpu.memory_space<vmem>>, vector<2x256xf32>
    %c0_1 = arith.constant 0 : index
    %c0_2 = arith.constant 0 : index
    %1 = vector.load %arg1[%c0_1, %c0_2] : memref<4x256xf32, #tpu.memory_space<vmem>>, vector<1x256xf32>
    %c1 = arith.constant 1 : index
    %c0_3 = arith.constant 0 : index
    %2 = vector.load %arg1[%c1, %c0_3] : memref<4x256xf32, #tpu.memory_space<vmem>>, vector<1x256xf32>
    %c2 = arith.constant 2 : index
    %c0_4 = arith.constant 0 : index
    %3 = vector.load %arg1[%c2, %c0_4] : memref<4x256xf32, #tpu.memory_space<vmem>>, vector<1x256xf32>
    %c3 = arith.constant 3 : index
    %c0_5 = arith.constant 0 : index
    %4 = vector.load %arg1[%c3, %c0_5] : memref<4x256xf32, #tpu.memory_space<vmem>>, vector<1x256xf32>
    %c2_6 = arith.constant 2 : index
    %c2_7 = arith.constant 2 : index
    %5 = memref.load %arg2[%c2_6, %c2_7] : memref<3x3xf32, #tpu.memory_space<smem>>
    %c2_8 = arith.constant 2 : index
    %c1_9 = arith.constant 1 : index
    %6 = memref.load %arg2[%c2_8, %c1_9] : memref<3x3xf32, #tpu.memory_space<smem>>
    %c2_10 = arith.constant 2 : index
    %c0_11 = arith.constant 0 : index
    %7 = memref.load %arg2[%c2_10, %c0_11] : memref<3x3xf32, #tpu.memory_space<smem>>
    %c1_12 = arith.constant 1 : index
    %c2_13 = arith.constant 2 : index
    %8 = memref.load %arg2[%c1_12, %c2_13] : memref<3x3xf32, #tpu.memory_space<smem>>
    %c1_14 = arith.constant 1 : index
    %c1_15 = arith.constant 1 : index
    %9 = memref.load %arg2[%c1_14, %c1_15] : memref<3x3xf32, #tpu.memory_space<smem>>
    %c1_16 = arith.constant 1 : index
    %c0_17 = arith.constant 0 : index
    %10 = memref.load %arg2[%c1_16, %c0_17] : memref<3x3xf32, #tpu.memory_space<smem>>
    %c0_18 = arith.constant 0 : index
    %c2_19 = arith.constant 2 : index
    %11 = memref.load %arg2[%c0_18, %c2_19] : memref<3x3xf32, #tpu.memory_space<smem>>
    %c0_20 = arith.constant 0 : index
    %c1_21 = arith.constant 1 : index
    %12 = memref.load %arg2[%c0_20, %c1_21] : memref<3x3xf32, #tpu.memory_space<smem>>
    %c0_22 = arith.constant 0 : index
    %c0_23 = arith.constant 0 : index
    %13 = memref.load %arg2[%c0_22, %c0_23] : memref<3x3xf32, #tpu.memory_space<smem>>
    %c1_i32 = arith.constant 1 : i32
    %14 = tpu.dynamic_rotate %0 by %c1_i32 dim 1 : vector<2x256xf32>, i32 -> vector<2x256xf32>
    %15 = vector.broadcast %1 : vector<1x256xf32> to vector<2x256xf32>
    %16 = arith.mulf %14, %15 : vector<2x256xf32>
    %c255_i32 = arith.constant 255 : i32
    %17 = tpu.dynamic_rotate %0 by %c255_i32 dim 1 : vector<2x256xf32>, i32 -> vector<2x256xf32>
    %18 = vector.broadcast %2 : vector<1x256xf32> to vector<2x256xf32>
    %19 = arith.mulf %17, %18 : vector<2x256xf32>
    %20 = vector.broadcast %5 : f32 to vector<2x256xf32>
    %21 = arith.mulf %20, %16 : vector<2x256xf32>
    %22 = vector.broadcast %6 : f32 to vector<2x256xf32>
    %23 = arith.mulf %22, %0 : vector<2x256xf32>
    %24 = arith.addf %21, %23 : vector<2x256xf32>
    %25 = vector.broadcast %7 : f32 to vector<2x256xf32>
    %26 = arith.mulf %25, %19 : vector<2x256xf32>
    %27 = arith.addf %24, %26 : vector<2x256xf32>
    %28 = vector.broadcast %8 : f32 to vector<2x256xf32>
    %29 = arith.mulf %28, %16 : vector<2x256xf32>
    %30 = vector.broadcast %9 : f32 to vector<2x256xf32>
    %31 = arith.mulf %30, %0 : vector<2x256xf32>
    %32 = arith.addf %29, %31 : vector<2x256xf32>
    %33 = vector.broadcast %10 : f32 to vector<2x256xf32>
    %34 = arith.mulf %33, %19 : vector<2x256xf32>
    %35 = arith.addf %32, %34 : vector<2x256xf32>
    %36 = vector.broadcast %11 : f32 to vector<2x256xf32>
    %37 = arith.mulf %36, %16 : vector<2x256xf32>
    %38 = vector.broadcast %12 : f32 to vector<2x256xf32>
    %39 = arith.mulf %38, %0 : vector<2x256xf32>
    %40 = arith.addf %37, %39 : vector<2x256xf32>
    %41 = vector.broadcast %13 : f32 to vector<2x256xf32>
    %42 = arith.mulf %41, %19 : vector<2x256xf32>
    %43 = arith.addf %40, %42 : vector<2x256xf32>
    %c16_i32 = arith.constant 16 : i32
    %44 = tpu.dynamic_rotate %27 by %c16_i32 dim 1 : vector<2x256xf32>, i32 -> vector<2x256xf32>
    %45 = vector.broadcast %3 : vector<1x256xf32> to vector<2x256xf32>
    %46 = arith.mulf %44, %45 : vector<2x256xf32>
    %47 = arith.addf %35, %46 : vector<2x256xf32>
    %c240_i32 = arith.constant 240 : i32
    %48 = tpu.dynamic_rotate %43 by %c240_i32 dim 1 : vector<2x256xf32>, i32 -> vector<2x256xf32>
    %49 = vector.broadcast %4 : vector<1x256xf32> to vector<2x256xf32>
    %50 = arith.mulf %48, %49 : vector<2x256xf32>
    %51 = arith.addf %47, %50 : vector<2x256xf32>
    %c0_24 = arith.constant 0 : index
    %52 = memref.load %arg3[%c0_24] : memref<1xf32, #tpu.memory_space<smem>>
    %53 = vector.broadcast %52 : f32 to vector<2x256xf32>
    %54 = arith.addf %51, %53 : vector<2x256xf32>
    %cst = arith.constant 5.000000e-01 : f32
    %55 = vector.broadcast %cst : f32 to vector<2x256xf32>
    %56 = arith.mulf %55, %54 : vector<2x256xf32>
    %cst_25 = arith.constant 0.707106769 : f32
    %57 = vector.broadcast %cst_25 : f32 to vector<2x256xf32>
    %58 = arith.mulf %54, %57 : vector<2x256xf32>
    %59 = math.erf %58 : vector<2x256xf32>
    %cst_26 = arith.constant 1.000000e+00 : f32
    %60 = vector.broadcast %cst_26 : f32 to vector<2x256xf32>
    %61 = arith.addf %60, %59 : vector<2x256xf32>
    %62 = arith.mulf %56, %61 : vector<2x256xf32>
    %c2_27 = arith.constant 2 : index
    %c2_28 = arith.constant 2 : index
    %63 = memref.load %arg4[%c2_27, %c2_28] : memref<3x3xf32, #tpu.memory_space<smem>>
    %c2_29 = arith.constant 2 : index
    %c1_30 = arith.constant 1 : index
    %64 = memref.load %arg4[%c2_29, %c1_30] : memref<3x3xf32, #tpu.memory_space<smem>>
    %c2_31 = arith.constant 2 : index
    %c0_32 = arith.constant 0 : index
    %65 = memref.load %arg4[%c2_31, %c0_32] : memref<3x3xf32, #tpu.memory_space<smem>>
    %c1_33 = arith.constant 1 : index
    %c2_34 = arith.constant 2 : index
    %66 = memref.load %arg4[%c1_33, %c2_34] : memref<3x3xf32, #tpu.memory_space<smem>>
    %c1_35 = arith.constant 1 : index
    %c1_36 = arith.constant 1 : index
    %67 = memref.load %arg4[%c1_35, %c1_36] : memref<3x3xf32, #tpu.memory_space<smem>>
    %c1_37 = arith.constant 1 : index
    %c0_38 = arith.constant 0 : index
    %68 = memref.load %arg4[%c1_37, %c0_38] : memref<3x3xf32, #tpu.memory_space<smem>>
    %c0_39 = arith.constant 0 : index
    %c2_40 = arith.constant 2 : index
    %69 = memref.load %arg4[%c0_39, %c2_40] : memref<3x3xf32, #tpu.memory_space<smem>>
    %c0_41 = arith.constant 0 : index
    %c1_42 = arith.constant 1 : index
    %70 = memref.load %arg4[%c0_41, %c1_42] : memref<3x3xf32, #tpu.memory_space<smem>>
    %c0_43 = arith.constant 0 : index
    %c0_44 = arith.constant 0 : index
    %71 = memref.load %arg4[%c0_43, %c0_44] : memref<3x3xf32, #tpu.memory_space<smem>>
    %c1_i32_45 = arith.constant 1 : i32
    %72 = tpu.dynamic_rotate %62 by %c1_i32_45 dim 1 : vector<2x256xf32>, i32 -> vector<2x256xf32>
    %73 = vector.broadcast %1 : vector<1x256xf32> to vector<2x256xf32>
    %74 = arith.mulf %72, %73 : vector<2x256xf32>
    %c255_i32_46 = arith.constant 255 : i32
    %75 = tpu.dynamic_rotate %62 by %c255_i32_46 dim 1 : vector<2x256xf32>, i32 -> vector<2x256xf32>
    %76 = vector.broadcast %2 : vector<1x256xf32> to vector<2x256xf32>
    %77 = arith.mulf %75, %76 : vector<2x256xf32>
    %78 = vector.broadcast %63 : f32 to vector<2x256xf32>
    %79 = arith.mulf %78, %74 : vector<2x256xf32>
    %80 = vector.broadcast %64 : f32 to vector<2x256xf32>
    %81 = arith.mulf %80, %62 : vector<2x256xf32>
    %82 = arith.addf %79, %81 : vector<2x256xf32>
    %83 = vector.broadcast %65 : f32 to vector<2x256xf32>
    %84 = arith.mulf %83, %77 : vector<2x256xf32>
    %85 = arith.addf %82, %84 : vector<2x256xf32>
    %86 = vector.broadcast %66 : f32 to vector<2x256xf32>
    %87 = arith.mulf %86, %74 : vector<2x256xf32>
    %88 = vector.broadcast %67 : f32 to vector<2x256xf32>
    %89 = arith.mulf %88, %62 : vector<2x256xf32>
    %90 = arith.addf %87, %89 : vector<2x256xf32>
    %91 = vector.broadcast %68 : f32 to vector<2x256xf32>
    %92 = arith.mulf %91, %77 : vector<2x256xf32>
    %93 = arith.addf %90, %92 : vector<2x256xf32>
    %94 = vector.broadcast %69 : f32 to vector<2x256xf32>
    %95 = arith.mulf %94, %74 : vector<2x256xf32>
    %96 = vector.broadcast %70 : f32 to vector<2x256xf32>
    %97 = arith.mulf %96, %62 : vector<2x256xf32>
    %98 = arith.addf %95, %97 : vector<2x256xf32>
    %99 = vector.broadcast %71 : f32 to vector<2x256xf32>
    %100 = arith.mulf %99, %77 : vector<2x256xf32>
    %101 = arith.addf %98, %100 : vector<2x256xf32>
    %c16_i32_47 = arith.constant 16 : i32
    %102 = tpu.dynamic_rotate %85 by %c16_i32_47 dim 1 : vector<2x256xf32>, i32 -> vector<2x256xf32>
    %103 = vector.broadcast %3 : vector<1x256xf32> to vector<2x256xf32>
    %104 = arith.mulf %102, %103 : vector<2x256xf32>
    %105 = arith.addf %93, %104 : vector<2x256xf32>
    %c240_i32_48 = arith.constant 240 : i32
    %106 = tpu.dynamic_rotate %101 by %c240_i32_48 dim 1 : vector<2x256xf32>, i32 -> vector<2x256xf32>
    %107 = vector.broadcast %4 : vector<1x256xf32> to vector<2x256xf32>
    %108 = arith.mulf %106, %107 : vector<2x256xf32>
    %109 = arith.addf %105, %108 : vector<2x256xf32>
    %c0_49 = arith.constant 0 : index
    %110 = memref.load %arg5[%c0_49] : memref<1xf32, #tpu.memory_space<smem>>
    %111 = vector.broadcast %110 : f32 to vector<2x256xf32>
    %112 = arith.addf %109, %111 : vector<2x256xf32>
    %113 = arith.addf %112, %0 : vector<2x256xf32>
    %c0_50 = arith.constant 0 : index
    %c0_51 = arith.constant 0 : index
    %114 = vector.load %arg7[%c0_50, %c0_51] : memref<2x256xf32, #tpu.memory_space<vmem>>, vector<2x256xf32>
    tpu.vector_store %arg7[%c0_50, %c0_51], %113 {strides = array<i32>} : memref<2x256xf32, #tpu.memory_space<vmem>>, vector<2x256xf32>,
    return
  }
  func.func @transform_0(%arg0: i32) -> (i32, i32) {
    %c0_i32 = arith.constant 0 : i32
    %c0_i32_0 = arith.constant 0 : i32
    %c0_i32_1 = arith.constant 0 : i32
    return %c0_i32, %c0_i32_0 : i32, i32
  }
  func.func @transform_1(%arg0: i32) -> (i32, i32) {
    %c0_i32 = arith.constant 0 : i32
    %c0_i32_0 = arith.constant 0 : i32
    %c0_i32_1 = arith.constant 0 : i32
    return %c0_i32, %c0_i32_0 : i32, i32
  }
  func.func @transform_2(%arg0: i32) -> i32 {
    %c0_i32 = arith.constant 0 : i32
    %c0_i32_0 = arith.constant 0 : i32
    return %c0_i32 : i32
  }
  func.func @transform_3(%arg0: i32) -> (i32, i32) {
    %c0_i32 = arith.constant 0 : i32
    %c0_i32_0 = arith.constant 0 : i32
    %c0_i32_1 = arith.constant 0 : i32
    return %c0_i32, %c0_i32_0 : i32, i32
  }
  func.func @transform_4(%arg0: i32) -> i32 {
    %c0_i32 = arith.constant 0 : i32
    %c0_i32_0 = arith.constant 0 : i32
    return %c0_i32 : i32
  }
  func.func @transform_5(%arg0: i32) -> (i32, i32) {
    %c0_i32 = arith.constant 0 : i32
    %c0_i32_0 = arith.constant 0 : i32
    return %arg0, %c0_i32 : i32, i32
  }
  func.func @transform_6(%arg0: i32) -> (i32, i32) {
    %c0_i32 = arith.constant 0 : i32
    %c0_i32_0 = arith.constant 0 : i32
    return %arg0, %c0_i32 : i32, i32
  }
}

</mosaic_0001>

<llo_original>
// kernel: tpu_custom_call.1
$region0: #{tpu_custom_call.1}
  #allocation0 [shape = 'u32[]', space=smem, size = 0x4, offset = 0x4, fixed_abs, tag = 'smem constant byte address 0x4 - core index']
  #allocation1 [shape = 'u32[144,128]{1,0:T(1,128)}', space=vmem, size = 0x12000, scoped, tag = 'internal scratch']
  #allocation2 [shape = 'f32[1]{0:T(128)S(6)}', space=smem, size = 0x200, scoped, tag = 'scoped memory for tpu_custom_call.1']
  #allocation3 [shape = 'f32[1]{0:T(128)S(6)}', space=smem, size = 0x200, scoped, tag = 'scoped memory for tpu_custom_call.1']
  %s0 = inlined_call_operand.hbm [shape: f32[4,256], index: 0, kind: input, shape index: {}]
  %s1 = inlined_call_operand.vmem [shape: f32[3,3], index: 1, kind: input, shape index: {}]
  %s2 = inlined_call_operand.<no memory space> [shape: f32[1], index: 2, kind: input, shape index: {}]
  %s3 = inlined_call_operand.hbm [shape: f32[3,3], index: 3, kind: input, shape index: {}]
  %s4 = inlined_call_operand.<no memory space> [shape: f32[1], index: 4, kind: input, shape index: {}]
  %s5 = inlined_call_operand.vmem [shape: f32[2,256], index: 5, kind: input, shape index: {}]
  %s6 = inlined_call_operand.hbm [shape: f32[2,256], index: 6, kind: output, shape index: {}]
  %s7 = sld [smem:[#allocation0]]
  $region46: #{tpu_custom_call.1} parent=0
    _
  %s9 = ssub.s32 1, %s7
  %s10 = scalar_select 0, %s9, %s7
  %11 = sst [smem:[#allocation2]] %s2
  %12 = sst [smem:[#allocation3]] %s4
  $region1: #{tpu_custom_call.1} parent=0
    #allocation4 [shape = 'u8[4096]{0}', space=vmem, size = 0x1000, scoped, tag = 'input window, operand 0, single buffered']
    #allocation5 [shape = 's32[1]{0}', space=sflag, size = 0x4, scoped, tag = 'scoped memory for tpu_custom_call.1']
    #allocation6 [shape = 's32[1]{0}', space=sflag, size = 0x4, scoped, tag = 'scoped memory for tpu_custom_call.1']
    #allocation7 [shape = 's32[1]{0}', space=sflag, size = 0x4, scoped, tag = 'scoped memory for tpu_custom_call.1']
    #allocation8 [shape = 's32[1]{0}', space=sflag, size = 0x4, scoped, tag = 'scoped memory for tpu_custom_call.1']
    #allocation9 [shape = 'u8[2048]{0}', space=smem, size = 0x800, scoped, tag = 'input window, operand 1, single buffered']
    #allocation10 [shape = 'u8[2048]{0}', space=smem, size = 0x800, scoped, tag = 'input window, operand 3, single buffered']
    #allocation11 [shape = 'u8[2048]{0}', space=vmem, size = 0x800, scoped, tag = 'output window, operand 0, single buffered']
    %13 = vsyncpa [#allocation5], 0
    %14 = vsyncpa [#allocation8], 0
    %15 = vsyncpa [#allocation7], 0
    %16 = vsyncpa [#allocation6], 0
    // Predicated region
    $region2: #{tpu_custom_call.1} parent=1 // pred_check
      _
    $region3: #{tpu_custom_call.1} parent=1 // pred_check_branch
      %18 = sbr.rel (0) target = $region5
    $region4: #{tpu_custom_call.1} parent=1 // pred_region
      %s20 = ssub.s32 128, 128
      %21 = vsyncadd [#allocation5], %s20
      %s23 = sshll.u32 [#allocation4], 4
      %s24 = int_to_ptr.vmem [resolvable:$true] %s23
      %26 = dma.hbm_to_vmem [thread:$0]  %s0, 128, %s24, [#allocation5]
    $region5: #{tpu_custom_call.1} parent=1 // pred_fallthru
      _
    // Predicated region
    $region6: #{tpu_custom_call.1} parent=1 // pred_check
      _
    $region7: #{tpu_custom_call.1} parent=1 // pred_check_branch
      %28 = sbr.rel (0) target = $region9
    $region8: #{tpu_custom_call.1} parent=1 // pred_region
      %s30 = ssub.s32 64, 64
      %31 = vsyncadd [#allocation8], %s30
      %s33 = sshll.u32 %s1, 4
      %s34 = int_to_ptr.vmem [resolvable:$true] %s33
      %36 = dma.vmem_to_smem %s34, 64, [#allocation9], [#allocation8]
    $region9: #{tpu_custom_call.1} parent=1 // pred_fallthru
      _
    // Predicated region
    $region10: #{tpu_custom_call.1} parent=1 // pred_check
      _
    $region11: #{tpu_custom_call.1} parent=1 // pred_check_branch
      %38 = sbr.rel (0) target = $region13
    $region12: #{tpu_custom_call.1} parent=1 // pred_region
      _
    $region13: #{tpu_custom_call.1} parent=1 // pred_fallthru
      _
    // Predicated region
    $region14: #{tpu_custom_call.1} parent=1 // pred_check
      _
    $region15: #{tpu_custom_call.1} parent=1 // pred_check_branch
      %40 = sbr.rel (0) target = $region17
    $region16: #{tpu_custom_call.1} parent=1 // pred_region
      %s42 = ssub.s32 64, 64
      %43 = vsyncadd [#allocation7], %s42
      %46 = dma.hbm_to_smem %s3, 64, [#allocation10], [#allocation7]
    $region17: #{tpu_custom_call.1} parent=1 // pred_fallthru
      _
    // Predicated region
    $region18: #{tpu_custom_call.1} parent=1 // pred_check
      _
    $region19: #{tpu_custom_call.1} parent=1 // pred_check_branch
      %48 = sbr.rel (0) target = $region21
    $region20: #{tpu_custom_call.1} parent=1 // pred_region
      _
    $region21: #{tpu_custom_call.1} parent=1 // pred_fallthru
      _
    // Predicated region
    $region22: #{tpu_custom_call.1} parent=1 // pred_check
      _
    $region23: #{tpu_custom_call.1} parent=1 // pred_check_branch
      %50 = sbr.rel (0) target = $region25
    $region24: #{tpu_custom_call.1} parent=1 // pred_region
      _
    $region25: #{tpu_custom_call.1} parent=1 // pred_fallthru
      _
    // Predicated region
    $region26: #{tpu_custom_call.1} parent=1 // pred_check
      _
    $region27: #{tpu_custom_call.1} parent=1 // pred_check_branch
      %52 = sbr.rel (0) target = $region29
    $region28: #{tpu_custom_call.1} parent=1 // pred_region
      %53 = dma.done [#allocation5], 128
    $region29: #{tpu_custom_call.1} parent=1 // pred_fallthru
      _
    // Predicated region
    $region30: #{tpu_custom_call.1} parent=1 // pred_check
      _
    $region31: #{tpu_custom_call.1} parent=1 // pred_check_branch
      %55 = sbr.rel (0) target = $region33
    $region32: #{tpu_custom_call.1} parent=1 // pred_region
      %56 = dma.done [#allocation8], 64
    $region33: #{tpu_custom_call.1} parent=1 // pred_fallthru
      _
    // Predicated region
    $region34: #{tpu_custom_call.1} parent=1 // pred_check
      _
    $region35: #{tpu_custom_call.1} parent=1 // pred_check_branch
      %58 = sbr.rel (0) target = $region37
    $region36: #{tpu_custom_call.1} parent=1 // pred_region
      %59 = dma.done [#allocation7], 64
    $region37: #{tpu_custom_call.1} parent=1 // pred_fallthru
      _
    %60 = sfence
    %v61 = vld [vmem:[%s5] sm:$0xf]
    %v62 = vld [vmem:[#allocation4] ss:$4 sm:$0x3]
    %s63 = scalar_lea.vmem [#allocation4], 1
    %v64 = vld [vmem:[%s63] ss:$4 sm:$0x3]
    %s65 = scalar_lea.vmem [#allocation4], 2
    %v66 = vld [vmem:[%s65] ss:$4 sm:$0x3]
    %s67 = scalar_lea.vmem [#allocation4], 3
    %v68 = vld [vmem:[%s67] ss:$4 sm:$0x3]
    %s69 = sld [smem:[#allocation9 + $0x102]]
    %s70 = sld [smem:[#allocation9 + $0x101]]
    %s71 = sld [smem:[#allocation9 + $0x100]]
    %s72 = sld [smem:[#allocation9 + $0x82]]
    %s73 = sld [smem:[#allocation9 + $0x81]]
    %s74 = sld [smem:[#allocation9 + $0x80]]
    %s75 = sld [smem:[#allocation9 + $0x2]]
    %s76 = sld [smem:[#allocation9 + $0x1]]
    %s77 = sld [smem:[#allocation9]]
    %v80 = vunpack.c.l.s4 1983009808
    %v81 = vunpack.c.0.s8 %v80
    %v82 = vlaneseq
    %v83 = vshrl.u32 %v82, 7
    %v84 = vsub.s32 %v81, %v83
    %v85 = vrot.slane %v61, %v84
    %v86 = vcombine.high %v85, %v85
    %89 = vrot.lane.b32.xlu0 %v85, 1
    %v90 = vpop.permute.xlu0 %89
    %91 = vrot.lane.b32.xlu0 %v86, 1
    %v92 = vpop.permute.xlu0 %91
    %v93 = vlaneseq
    %v94 = vand.u32 %v93, 127
    %vm95 = vcmp.lt.s32.totalorder %v94, 1
    %v96 = vsel %vm95, %v90, %v92
    %v97 = vsel %vm95, %v92, %v90
    %v99 = vlaneseq
    %v100 = vshrl.u32 %v99, 7
    %v101 = vsub.s32 0, %v100
    %v102 = vrot.slane %v62, %v101
    %v103 = vlaneseq
    %v104 = vshrl.u32 %v103, 7
    %v105 = vsub.s32 1, %v104
    %v106 = vrot.slane %v62, %v105
    %v109 = vmul.f32 %v97, %v102
    %v110 = vmul.f32 %v96, %v106
    %111 = vrot.lane.b32.xlu0 %v85, 127
    %v112 = vpop.permute.xlu0 %111
    %113 = vrot.lane.b32.xlu0 %v86, 127
    %v114 = vpop.permute.xlu0 %113
    %vm115 = vcmp.lt.s32.totalorder %v94, 127
    %v116 = vsel %vm115, %v112, %v114
    %v117 = vsel %vm115, %v114, %v112
    %v119 = vlaneseq
    %v120 = vshrl.u32 %v119, 7
    %v121 = vsub.s32 0, %v120
    %v122 = vrot.slane %v64, %v121
    %v123 = vlaneseq
    %v124 = vshrl.u32 %v123, 7
    %v125 = vsub.s32 1, %v124
    %v126 = vrot.slane %v64, %v125
    %v129 = vmul.f32 %v116, %v122
    %v130 = vmul.f32 %v117, %v126
    %v131 = vstv %s69
    %v132 = vmul.f32 %v131, %v109
    %v133 = vmul.f32 %v131, %v110
    %v134 = vstv %s70
    %v135 = vmul.f32 %v134, %v61
    %v138 = vunpack.c.l.s4 1983009808
    %v139 = vunpack.c.0.s8 %v138
    %v140 = vlaneseq
    %v141 = vshrl.u32 %v140, 7
    %v142 = vsub.s32 %v139, %v141
    %v143 = vrot.slane %v135, %v142
    %v144 = vcombine.high %v143, %v143
    %v147 = vadd.f32 %v132, %v143
    %v148 = vadd.f32 %v133, %v144
    %v149 = vstv %s71
    %v150 = vmul.f32 %v149, %v129
    %v151 = vmul.f32 %v149, %v130
    %v152 = vadd.f32 %v147, %v150
    %v153 = vadd.f32 %v148, %v151
    %v154 = vstv %s72
    %v155 = vmul.f32 %v154, %v109
    %v156 = vmul.f32 %v154, %v110
    %v157 = vstv %s73
    %v158 = vmul.f32 %v157, %v61
    %v161 = vunpack.c.l.s4 1983009808
    %v162 = vunpack.c.0.s8 %v161
    %v163 = vlaneseq
    %v164 = vshrl.u32 %v163, 7
    %v165 = vsub.s32 %v162, %v164
    %v166 = vrot.slane %v158, %v165
    %v167 = vcombine.high %v166, %v166
    %v170 = vadd.f32 %v155, %v166
    %v171 = vadd.f32 %v156, %v167
    %v172 = vstv %s74
    %v173 = vmul.f32 %v172, %v129
    %v174 = vmul.f32 %v172, %v130
    %v175 = vadd.f32 %v170, %v173
    %v176 = vadd.f32 %v171, %v174
    %v177 = vstv %s75
    %v178 = vmul.f32 %v177, %v109
    %v179 = vmul.f32 %v177, %v110
    %v180 = vstv %s76
    %v181 = vmul.f32 %v180, %v61
    %v184 = vunpack.c.l.s4 1983009808
    %v185 = vunpack.c.0.s8 %v184
    %v186 = vlaneseq
    %v187 = vshrl.u32 %v186, 7
    %v188 = vsub.s32 %v185, %v187
    %v189 = vrot.slane %v181, %v188
    %v190 = vcombine.high %v189, %v189
    %v193 = vadd.f32 %v178, %v189
    %v194 = vadd.f32 %v179, %v190
    %v195 = vstv %s77
    %v196 = vmul.f32 %v195, %v129
    %v197 = vmul.f32 %v195, %v130
    %v198 = vadd.f32 %v193, %v196
    %v199 = vadd.f32 %v194, %v197
    %200 = vrot.lane.b32.xlu0 %v152, 16
    %v201 = vpop.permute.xlu0 %200
    %202 = vrot.lane.b32.xlu0 %v153, 16
    %v203 = vpop.permute.xlu0 %202
    %vm204 = vcmp.lt.s32.totalorder %v94, 16
    %v205 = vsel %vm204, %v201, %v203
    %v206 = vsel %vm204, %v203, %v201
    %v208 = vlaneseq
    %v209 = vshrl.u32 %v208, 7
    %v210 = vsub.s32 0, %v209
    %v211 = vrot.slane %v66, %v210
    %v212 = vlaneseq
    %v213 = vshrl.u32 %v212, 7
    %v214 = vsub.s32 1, %v213
    %v215 = vrot.slane %v66, %v214
    %v218 = vmul.f32 %v206, %v211
    %v219 = vmul.f32 %v205, %v215
    %v220 = vadd.f32 %v175, %v218
    %v221 = vadd.f32 %v176, %v219
    %222 = vrot.lane.b32.xlu0 %v198, 112
    %v223 = vpop.permute.xlu0 %222
    %224 = vrot.lane.b32.xlu0 %v199, 112
    %v225 = vpop.permute.xlu0 %224
    %vm226 = vcmp.lt.s32.totalorder %v94, 112
    %v227 = vsel %vm226, %v223, %v225
    %v228 = vsel %vm226, %v225, %v223
    %v230 = vlaneseq
    %v231 = vshrl.u32 %v230, 7
    %v232 = vsub.s32 0, %v231
    %v233 = vrot.slane %v68, %v232
    %v234 = vlaneseq
    %v235 = vshrl.u32 %v234, 7
    %v236 = vsub.s32 1, %v235
    %v237 = vrot.slane %v68, %v236
    %v240 = vmul.f32 %v227, %v233
    %v241 = vmul.f32 %v228, %v237
    %v242 = vadd.f32 %v220, %v240
    %v243 = vadd.f32 %v221, %v241
    %s244 = sld [smem:[#allocation2]]
    %v245 = vstv %s244
    %v246 = vadd.f32 %v242, %v245
    %v247 = vadd.f32 %v243, %v245
    %v248 = vmul.f32 %v246, 0.5
    %v249 = vmul.f32 %v247, 0.5
    %v250 = vmul.f32 %v246, 0.70710677
    %v251 = vmul.f32 %v247, 0.70710677
    %v252 = verf.f32.pop %v250
    %v253 = verf.f32.pop %v251
    %v254 = vadd.f32 %v252, 1.0
    %v255 = vadd.f32 %v253, 1.0
    %v256 = vmul.f32 %v248, %v254
    %v257 = vmul.f32 %v249, %v255
    %s258 = sld [smem:[#allocation10 + $0x102]]
    %s259 = sld [smem:[#allocation10 + $0x101]]
    %s260 = sld [smem:[#allocation10 + $0x100]]
    %s261 = sld [smem:[#allocation10 + $0x82]]
    %s262 = sld [smem:[#allocation10 + $0x81]]
    %s263 = sld [smem:[#allocation10 + $0x80]]
    %s264 = sld [smem:[#allocation10 + $0x2]]
    %s265 = sld [smem:[#allocation10 + $0x1]]
    %s266 = sld [smem:[#allocation10]]
    %267 = vrot.lane.b32.xlu0 %v256, 1
    %v268 = vpop.permute.xlu0 %267
    %269 = vrot.lane.b32.xlu0 %v257, 1
    %v270 = vpop.permute.xlu0 %269
    %v271 = vsel %vm95, %v268, %v270
    %v272 = vsel %vm95, %v270, %v268
    %v273 = vmul.f32 %v272, %v102
    %v274 = vmul.f32 %v271, %v106
    %275 = vrot.lane.b32.xlu0 %v256, 127
    %v276 = vpop.permute.xlu0 %275
    %277 = vrot.lane.b32.xlu0 %v257, 127
    %v278 = vpop.permute.xlu0 %277
    %v279 = vsel %vm115, %v276, %v278
    %v280 = vsel %vm115, %v278, %v276
    %v281 = vmul.f32 %v279, %v122
    %v282 = vmul.f32 %v280, %v126
    %v283 = vstv %s258
    %v284 = vmul.f32 %v283, %v273
    %v285 = vmul.f32 %v283, %v274
    %v286 = vstv %s259
    %v287 = vmul.f32 %v286, %v256
    %v288 = vmul.f32 %v286, %v257
    %v289 = vadd.f32 %v284, %v287
    %v290 = vadd.f32 %v285, %v288
    %v291 = vstv %s260
    %v292 = vmul.f32 %v291, %v281
    %v293 = vmul.f32 %v291, %v282
    %v294 = vadd.f32 %v289, %v292
    %v295 = vadd.f32 %v290, %v293
    %v296 = vstv %s261
    %v297 = vmul.f32 %v296, %v273
    %v298 = vmul.f32 %v296, %v274
    %v299 = vstv %s262
    %v300 = vmul.f32 %v299, %v256
    %v301 = vmul.f32 %v299, %v257
    %v302 = vadd.f32 %v297, %v300
    %v303 = vadd.f32 %v298, %v301
    %v304 = vstv %s263
    %v305 = vmul.f32 %v304, %v281
    %v306 = vmul.f32 %v304, %v282
    %v307 = vadd.f32 %v302, %v305
    %v308 = vadd.f32 %v303, %v306
    %v309 = vstv %s264
    %v310 = vmul.f32 %v309, %v273
    %v311 = vmul.f32 %v309, %v274
    %v312 = vstv %s265
    %v313 = vmul.f32 %v312, %v256
    %v314 = vmul.f32 %v312, %v257
    %v315 = vadd.f32 %v310, %v313
    %v316 = vadd.f32 %v311, %v314
    %v317 = vstv %s266
    %v318 = vmul.f32 %v317, %v281
    %v319 = vmul.f32 %v317, %v282
    %v320 = vadd.f32 %v315, %v318
    %v321 = vadd.f32 %v316, %v319
    %322 = vrot.lane.b32.xlu0 %v294, 16
    %v323 = vpop.permute.xlu0 %322
    %324 = vrot.lane.b32.xlu0 %v295, 16
    %v325 = vpop.permute.xlu0 %324
    %v326 = vsel %vm204, %v323, %v325
    %v327 = vsel %vm204, %v325, %v323
    %v328 = vmul.f32 %v327, %v211
    %v329 = vmul.f32 %v326, %v215
    %v330 = vadd.f32 %v307, %v328
    %v331 = vadd.f32 %v308, %v329
    %332 = vrot.lane.b32.xlu0 %v320, 112
    %v333 = vpop.permute.xlu0 %332
    %334 = vrot.lane.b32.xlu0 %v321, 112
    %v335 = vpop.permute.xlu0 %334
    %v336 = vsel %vm226, %v333, %v335
    %v337 = vsel %vm226, %v335, %v333
    %v338 = vmul.f32 %v336, %v233
    %v339 = vmul.f32 %v337, %v237
    %v340 = vadd.f32 %v330, %v338
    %v341 = vadd.f32 %v331, %v339
    %s342 = sld [smem:[#allocation3]]
    %v343 = vstv %s342
    %v344 = vadd.f32 %v340, %v343
    %v345 = vadd.f32 %v341, %v343
    %v346 = vadd.f32 %v344, %v85
    %v347 = vadd.f32 %v345, %v86
    %v350 = vcombine.low %v346, %v347
    %v352 = vunpack.c.l.s4 1983009808
    %v353 = vunpack.c.0.s8 %v352
    %v354 = vlaneseq
    %v355 = vshrl.u32 %v354, 7
    %v356 = vsub.s32 %v353, %v355
    %v357 = vrot.slane %v350, %v356
    %359 = vst [vmem:[#allocation11] sm:$0xf] %v357
    // Predicated region
    $region38: #{tpu_custom_call.1} parent=1 // pred_check
      _
    $region39: #{tpu_custom_call.1} parent=1 // pred_check_branch
      %361 = sbr.rel (0) target = $region41
    $region40: #{tpu_custom_call.1} parent=1 // pred_region
      %s363 = ssub.s32 64, 64
      %364 = vsyncadd [#allocation6], %s363
      %s366 = sshll.u32 [#allocation11], 4
      %s367 = int_to_ptr.vmem [resolvable:$true] %s366
      %369 = dma.vmem_to_hbm [thread:$0]  %s367, 64, %s6, [#allocation6]
    $region41: #{tpu_custom_call.1} parent=1 // pred_fallthru
      _
    // Predicated region
    $region42: #{tpu_custom_call.1} parent=1 // pred_check
      _
    $region43: #{tpu_custom_call.1} parent=1 // pred_check_branch
      %371 = sbr.rel (0) target = $region45
    $region44: #{tpu_custom_call.1} parent=1 // pred_region
      %372 = dma.done [#allocation6], 64
    $region45: #{tpu_custom_call.1} parent=1 // pred_fallthru
      _
    %373 = vsyncpa [#allocation5], 1
    %374 = vsyncpa [#allocation6], 1
    %375 = vsyncpa [#allocation7], 1
    %376 = vsyncpa [#allocation8], 1

</llo_original>
